<compile_context>
chip_gen: v6e
topology: v6e:2x2x1
jax: 0.10.0
libtpu: 0.0.40
codegen_flags: <defaults>
</compile_context>

<pallas_src>
import jax
import jax.numpy as jnp
from jax.experimental import pallas as pl
from jax.experimental.pallas import tpu as pltpu

STATE_DIM = 3     # Pendulum observation: (cos th, sin th, thdot)
ACTION_DIM = 1    # Pendulum action
H1, H2, H3 = 256, 128, 128
MAX_ACTION = 2.0


def munet_kernel(xt_ref, sp_ref, w2t_ref, w3t_ref, out_ref):
    """Fused forward for one (STATE_DIM, TB) feature-major batch tile.

    sp_ref packs every small parameter into a single (256, 8) f32 slab:
      col 0          : b1  (256)
      col 1          : b2  (first 128 rows)
      col 2          : b3  (first 128 rows)
      col 3          : fc_mu weight as a column (first 128 rows)
      col 4, row 0   : fc_mu bias
      cols 5..7      : w1^T (256 x 3)
    """
    xt = xt_ref[...]          # (3, TB)  f32, batch on lanes
    sp = sp_ref[...]          # (256, 8) f32 packed small params

    # --- fc1 (K=3): three outer-product FMAs on the VPU; skip the MXU ---
    h = (sp[:, 5:6] * xt[0:1, :]
         + sp[:, 6:7] * xt[1:2, :]
         + sp[:, 7:8] * xt[2:3, :]
         + sp[:, 0:1])
    h = jnp.maximum(h, 0.0)                                     # (256, TB)

    # --- fc2 / fc3: MXU bf16 matmuls, f32 accumulation ---
    h = jnp.dot(w2t_ref[...], h.astype(jnp.bfloat16),
                preferred_element_type=jnp.float32) + sp[:H2, 1:2]
    h = jnp.maximum(h, 0.0)                                     # (128, TB)

    h = jnp.dot(w3t_ref[...], h.astype(jnp.bfloat16),
                preferred_element_type=jnp.float32) + sp[:H3, 2:3]
    h = jnp.maximum(h, 0.0)                                     # (128, TB)

    # --- fc_mu (N=1): VPU multiply + sublane reduce (XLU) instead of MXU ---
    mu = jnp.sum(h * sp[:H3, 3:4], axis=0, keepdims=True) + sp[0:1, 4:5]
    out_ref[...] = jnp.tanh(mu) * MAX_ACTION                    # (1, TB) lane-dense


def pack_params(params):
    """Pack all sub-KB params into one (256, 8) f32 slab; fc2/fc3 -> bf16, transposed."""
    (w1, b1), (w2, b2), (w3, b3), (wmu, bmu) = params
    assert ACTION_DIM == 1 and wmu.shape == (H3, ACTION_DIM)
    sp = jnp.zeros((H1, 8), jnp.float32)
    sp = sp.at[:H1, 0].set(b1.reshape(-1))
    sp = sp.at[:H2, 1].set(b2.reshape(-1))
    sp = sp.at[:H3, 2].set(b3.reshape(-1))
    sp = sp.at[:H3, 3].set(wmu.reshape(-1))
    sp = sp.at[0, 4].set(bmu.reshape(-1)[0])
    sp = sp.at[:H1, 5:5 + STATE_DIM].set(w1.T)                  # w1^T (256, 3)
    return sp, w2.T.astype(jnp.bfloat16), w3.T.astype(jnp.bfloat16)


def munet_forward(x, params, *, tb=256):
    assert tb % 128 == 0, "batch tile must be a multiple of 128 (lane width)"
    sp, w2t, w3t = pack_params(params)
    B = x.shape[0]
    n_tiles = pl.cdiv(B, tb)
    bp = n_tiles * tb

    # Feature-major input: batch on the lane axis, contiguous rows in HBM.
    xt = x.T                                                    # (3, B)
    if bp != B:
        xt = jnp.pad(xt, ((0, 0), (0, bp - B)))

    flops = 2 * bp * (STATE_DIM * H1 + H1 * H2 + H2 * H3 + H3 * ACTION_DIM)
    bytes_accessed = (xt.size * 4 + sp.size * 4
                      + w2t.size * 2 + w3t.size * 2 + bp * ACTION_DIM * 4)

    out = pl.pallas_call(
        munet_kernel,
        out_shape=jax.ShapeDtypeStruct((ACTION_DIM, bp), jnp.float32),
        grid=(n_tiles,),
        in_specs=[
            pl.BlockSpec((STATE_DIM, tb), lambda i: (0, i)),    # batch-tiled input
            pl.BlockSpec((H1, 8), lambda i: (0, 0)),            # resident packed params
            pl.BlockSpec((H2, H1), lambda i: (0, 0)),           # resident fc2^T (bf16)
            pl.BlockSpec((H3, H2), lambda i: (0, 0)),           # resident fc3^T (bf16)
        ],
        out_specs=pl.BlockSpec((ACTION_DIM, tb), lambda i: (0, i)),
        compiler_params=pltpu.CompilerParams(
            dimension_semantics=("parallel",)),                 # shard batch over TCs
        cost_estimate=pl.CostEstimate(
            flops=flops,
            transcendentals=bp * ACTION_DIM,
            bytes_accessed=bytes_accessed),
    )(xt, sp, w2t, w3t)
    return out[:, :B].T                                         # (B, ACTION_DIM)


def init_linear(key, fan_in, fan_out):
    # PyTorch nn.Linear default init: U(-1/sqrt(fan_in), 1/sqrt(fan_in))
    kw, kb = jax.random.split(key)
    bound = 1.0 / jnp.sqrt(fan_in)
    w = jax.random.uniform(kw, (fan_in, fan_out), jnp.float32, -bound, bound)
    b = jax.random.uniform(kb, (1, fan_out), jnp.float32, -bound, bound)
    return w, b


def munet_reference_f32(x, params):
    (w1, b1), (w2, b2), (w3, b3), (wmu, bmu) = params
    h = jnp.maximum(x @ w1 + b1, 0.0)
    h = jnp.maximum(h @ w2 + b2, 0.0)
    h = jnp.maximum(h @ w3 + b3, 0.0)
    return jnp.tanh(h @ wmu + bmu) * MAX_ACTION


def munet_reference_bf16(x, params):
    # Mirrors the kernel's numerics: bf16 weights/activations for fc2/fc3, f32 accumulate.
    (w1, b1), (w2, b2), (w3, b3), (wmu, bmu) = params
    h = jnp.maximum(x @ w1 + b1, 0.0)
    h = jnp.maximum(jnp.dot(h.astype(jnp.bfloat16), w2.astype(jnp.bfloat16),
                            preferred_element_type=jnp.float32) + b2, 0.0)
    h = jnp.maximum(jnp.dot(h.astype(jnp.bfloat16), w3.astype(jnp.bfloat16),
                            preferred_element_type=jnp.float32) + b3, 0.0)
    return jnp.tanh(h @ wmu + bmu) * MAX_ACTION


if __name__ == "__main__":
    key = jax.random.PRNGKey(0)
    kx, k1, k2, k3, k4 = jax.random.split(key, 5)

    # B not a multiple of the batch tile on purpose (exercises padding + 2-step grid).
    B = 200
    x = jax.random.normal(kx, (B, STATE_DIM), jnp.float32)

    params = (
        init_linear(k1, STATE_DIM, H1),
        init_linear(k2, H1, H2),
        init_linear(k3, H2, H3),
        init_linear(k4, H3, ACTION_DIM),
    )

    mu = munet_forward(x, params, tb=128)
    mu = jax.block_until_ready(mu)
    assert mu.shape == (B, ACTION_DIM)

    # Tight check against a reference using identical (bf16-weight) numerics.
    ref_bf16 = munet_reference_bf16(x, params)
    assert jnp.allclose(mu, ref_bf16, atol=5e-3, rtol=5e-3), "mismatch vs bf16 reference"

    # Loose check against the exact f32 PyTorch semantics (covers bf16 quantization).
    ref_f32 = munet_reference_f32(x, params)
    assert jnp.allclose(mu, ref_f32, atol=5e-2, rtol=5e-2), "mismatch vs f32 reference"

    print("KERNEL_OK")
</pallas_src>

<mosaic_0001>
module attributes {stable_mosaic.version = 11 : i64} {
  func.func @munet_kernel(%arg0: i32, %arg1: memref<3x128xf32, #tpu.memory_space<vmem>>, %arg2: memref<256x8xf32, #tpu.memory_space<vmem>>, %arg3: memref<128x256xbf16, #tpu.memory_space<vmem>>, %arg4: memref<128x128xbf16, #tpu.memory_space<vmem>>, %arg5: memref<1x128xf32, #tpu.memory_space<vmem>>) attributes {dimension_semantics = [#tpu.dimension_semantics<parallel>], iteration_bounds = array<i64: 2>, scalar_prefetch = 0 : i64, scratch_operands = 0 : i64, tpu.core_type = #tpu.core_type<tc>, window_params = [{transform_indices = @transform_0, window_bounds = array<i64: 3, 128>}, {pipeline_mode = #tpu.pipeline_mode<synchronous>, transform_indices = @transform_1, window_bounds = array<i64: 256, 8>}, {pipeline_mode = #tpu.pipeline_mode<synchronous>, transform_indices = @transform_2, window_bounds = array<i64: 128, 256>}, {pipeline_mode = #tpu.pipeline_mode<synchronous>, transform_indices = @transform_3, window_bounds = array<i64: 128, 128>}, {transform_indices = @transform_4, window_bounds = array<i64: 1, 128>}]} {
    %c0 = arith.constant 0 : index
    %c0_0 = arith.constant 0 : index
    %0 = vector.load %arg1[%c0, %c0_0] : memref<3x128xf32, #tpu.memory_space<vmem>>, vector<3x128xf32>
    %c0_1 = arith.constant 0 : index
    %c0_2 = arith.constant 0 : index
    %1 = vector.load %arg2[%c0_1, %c0_2] : memref<256x8xf32, #tpu.memory_space<vmem>>, vector<256x8xf32>
    %2 = vector.extract_strided_slice %1 {offsets = [0, 5], sizes = [256, 1], strides = [1, 1]} : vector<256x8xf32> to vector<256x1xf32>
    %3 = vector.extract_strided_slice %0 {offsets = [0, 0], sizes = [1, 128], strides = [1, 1]} : vector<3x128xf32> to vector<1x128xf32>
    %4 = vector.broadcast %2 : vector<256x1xf32> to vector<256x128xf32>
    %5 = vector.broadcast %3 : vector<1x128xf32> to vector<256x128xf32>
    %6 = arith.mulf %4, %5 : vector<256x128xf32>
    %7 = vector.extract_strided_slice %1 {offsets = [0, 6], sizes = [256, 1], strides = [1, 1]} : vector<256x8xf32> to vector<256x1xf32>
    %8 = vector.extract_strided_slice %0 {offsets = [1, 0], sizes = [1, 128], strides = [1, 1]} : vector<3x128xf32> to vector<1x128xf32>
    %9 = vector.broadcast %7 : vector<256x1xf32> to vector<256x128xf32>
    %10 = vector.broadcast %8 : vector<1x128xf32> to vector<256x128xf32>
    %11 = arith.mulf %9, %10 : vector<256x128xf32>
    %12 = arith.addf %6, %11 : vector<256x128xf32>
    %13 = vector.extract_strided_slice %1 {offsets = [0, 7], sizes = [256, 1], strides = [1, 1]} : vector<256x8xf32> to vector<256x1xf32>
    %14 = vector.extract_strided_slice %0 {offsets = [2, 0], sizes = [1, 128], strides = [1, 1]} : vector<3x128xf32> to vector<1x128xf32>
    %15 = vector.broadcast %13 : vector<256x1xf32> to vector<256x128xf32>
    %16 = vector.broadcast %14 : vector<1x128xf32> to vector<256x128xf32>
    %17 = arith.mulf %15, %16 : vector<256x128xf32>
    %18 = arith.addf %12, %17 : vector<256x128xf32>
    %19 = vector.extract_strided_slice %1 {offsets = [0, 0], sizes = [256, 1], strides = [1, 1]} : vector<256x8xf32> to vector<256x1xf32>
    %20 = vector.broadcast %19 : vector<256x1xf32> to vector<256x128xf32>
    %21 = arith.addf %18, %20 : vector<256x128xf32>
    %cst = arith.constant 0.000000e+00 : f32
    %22 = vector.broadcast %cst : f32 to vector<256x128xf32>
    %23 = arith.maximumf %21, %22 : vector<256x128xf32>
    %c0_3 = arith.constant 0 : index
    %c0_4 = arith.constant 0 : index
    %24 = vector.load %arg3[%c0_3, %c0_4] : memref<128x256xbf16, #tpu.memory_space<vmem>>, vector<128x256xbf16>
    %25 = arith.truncf %23 : vector<256x128xf32> to vector<256x128xbf16>
    %cst_5 = arith.constant dense<0.000000e+00> : vector<128x128xf32>
    %26 = tpu.matmul %24, %25, %cst_5 {dimension_numbers = #tpu.dot_dimension_numbers<[1], [0], [0], [1], [0, 0, 1, 1], [], []>} : vector<128x256xbf16>, vector<256x128xbf16>, vector<128x128xf32> -> vector<128x128xf32>
    %27 = vector.extract_strided_slice %1 {offsets = [0, 1], sizes = [128, 1], strides = [1, 1]} : vector<256x8xf32> to vector<128x1xf32>
    %28 = vector.broadcast %27 : vector<128x1xf32> to vector<128x128xf32>
    %29 = arith.addf %26, %28 : vector<128x128xf32>
    %cst_6 = arith.constant 0.000000e+00 : f32
    %30 = vector.broadcast %cst_6 : f32 to vector<128x128xf32>
    %31 = arith.maximumf %29, %30 : vector<128x128xf32>
    %c0_7 = arith.constant 0 : index
    %c0_8 = arith.constant 0 : index
    %32 = vector.load %arg4[%c0_7, %c0_8] : memref<128x128xbf16, #tpu.memory_space<vmem>>, vector<128x128xbf16>
    %33 = arith.truncf %31 : vector<128x128xf32> to vector<128x128xbf16>
    %cst_9 = arith.constant dense<0.000000e+00> : vector<128x128xf32>
    %34 = tpu.matmul %32, %33, %cst_9 {dimension_numbers = #tpu.dot_dimension_numbers<[1], [0], [0], [1], [0, 0, 1, 1], [], []>} : vector<128x128xbf16>, vector<128x128xbf16>, vector<128x128xf32> -> vector<128x128xf32>
    %35 = vector.extract_strided_slice %1 {offsets = [0, 2], sizes = [128, 1], strides = [1, 1]} : vector<256x8xf32> to vector<128x1xf32>
    %36 = vector.broadcast %35 : vector<128x1xf32> to vector<128x128xf32>
    %37 = arith.addf %34, %36 : vector<128x128xf32>
    %cst_10 = arith.constant 0.000000e+00 : f32
    %38 = vector.broadcast %cst_10 : f32 to vector<128x128xf32>
    %39 = arith.maximumf %37, %38 : vector<128x128xf32>
    %40 = vector.extract_strided_slice %1 {offsets = [0, 3], sizes = [128, 1], strides = [1, 1]} : vector<256x8xf32> to vector<128x1xf32>
    %41 = vector.broadcast %40 : vector<128x1xf32> to vector<128x128xf32>
    %42 = arith.mulf %39, %41 : vector<128x128xf32>
    %cst_11 = arith.constant dense<0.000000e+00> : vector<128xf32>
    %43 = vector.multi_reduction <add>, %42, %cst_11 [0] : vector<128x128xf32> to vector<128xf32>
    %44 = vector.shape_cast %43 : vector<128xf32> to vector<1x128xf32>
    %45 = vector.extract_strided_slice %1 {offsets = [0, 4], sizes = [1, 1], strides = [1, 1]} : vector<256x8xf32> to vector<1x1xf32>
    %46 = vector.broadcast %45 : vector<1x1xf32> to vector<1x128xf32>
    %47 = arith.addf %44, %46 : vector<1x128xf32>
    %48 = math.tanh %47 : vector<1x128xf32>
    %cst_12 = arith.constant 2.000000e+00 : f32
    %49 = vector.broadcast %cst_12 : f32 to vector<1x128xf32>
    %50 = arith.mulf %48, %49 : vector<1x128xf32>
    %c0_13 = arith.constant 0 : index
    %c0_14 = arith.constant 0 : index
    %51 = vector.load %arg5[%c0_13, %c0_14] : memref<1x128xf32, #tpu.memory_space<vmem>>, vector<1x128xf32>
    tpu.vector_store %arg5[%c0_13, %c0_14], %50 {strides = array<i32>} : memref<1x128xf32, #tpu.memory_space<vmem>>, vector<1x128xf32>,
    return
  }
  func.func @transform_0(%arg0: i32) -> (i32, i32) {
    %c0_i32 = arith.constant 0 : i32
    %c0_i32_0 = arith.constant 0 : i32
    return %c0_i32, %arg0 : i32, i32
  }
  func.func @transform_1(%arg0: i32) -> (i32, i32) {
    %c0_i32 = arith.constant 0 : i32
    %c0_i32_0 = arith.constant 0 : i32
    %c0_i32_1 = arith.constant 0 : i32
    return %c0_i32, %c0_i32_0 : i32, i32
  }
  func.func @transform_2(%arg0: i32) -> (i32, i32) {
    %c0_i32 = arith.constant 0 : i32
    %c0_i32_0 = arith.constant 0 : i32
    %c0_i32_1 = arith.constant 0 : i32
    return %c0_i32, %c0_i32_0 : i32, i32
  }
  func.func @transform_3(%arg0: i32) -> (i32, i32) {
    %c0_i32 = arith.constant 0 : i32
    %c0_i32_0 = arith.constant 0 : i32
    %c0_i32_1 = arith.constant 0 : i32
    return %c0_i32, %c0_i32_0 : i32, i32
  }
  func.func @transform_4(%arg0: i32) -> (i32, i32) {
    %c0_i32 = arith.constant 0 : i32
    %c0_i32_0 = arith.constant 0 : i32
    return %c0_i32, %arg0 : i32, i32
  }
}

</mosaic_0001>

<llo_original>
// kernel: tpu_custom_call.1
$region0: #{tpu_custom_call.1}
  #allocation0 [shape = 'u32[]', space=smem, size = 0x4, offset = 0x4, fixed_abs, tag = 'smem constant byte address 0x4 - core index']
  #allocation1 [shape = 'u32[144,128]{1,0:T(1,128)}', space=vmem, size = 0x12000, scoped, tag = 'internal scratch']
  %s0 = inlined_call_operand.vmem [shape: f32[3,256], index: 0, kind: input, shape index: {}]
  %s1 = inlined_call_operand.vmem [shape: f32[256,8], index: 1, kind: input, shape index: {}]
  %s2 = inlined_call_operand.vmem [shape: bf16[128,256], index: 2, kind: input, shape index: {}]
  %s3 = inlined_call_operand.vmem [shape: bf16[128,128], index: 3, kind: input, shape index: {}]
  %s4 = inlined_call_operand.hbm [shape: f32[1,256], index: 4, kind: output, shape index: {}]
  %s5 = sld [smem:[#allocation0]]
  $region49: #{tpu_custom_call.1} parent=0
    _
  %s7 = ssub.s32 1, %s5
  %s8 = scalar_select 0, %s7, %s5
  $region1: #{tpu_custom_call.1} parent=0
    #allocation2 [shape = 'u8[1024]{0}', space=vmem, size = 0x400, scoped, tag = 'output window, operand 0']
    #allocation3 [shape = 's32[2]{0}', space=sflag, size = 0x8, scoped, tag = 'scoped memory for tpu_custom_call.1']
    %9 = vsyncpa [#allocation3], 0
    %s10 = scalar_lea.sflag [#allocation3], 1
    %11 = vsyncpa %s10, 0
    loop: start=0, step=1, limit=4
    $region2: #{tpu_custom_call.1} parent=1 // loop_pre_header
      _
    $region3: #{tpu_custom_call.1} parent=1 // loop_header
      %s13 = sphi 0, %s17
      %p14 = scmp.ge.s32.totalorder %s13, 4
      %s23 = sphi 0, %s25
      %s26 = sphi 0, %s23
      %s27 = sphi 0, %s26
      %s43 = sphi 0, %s27
      %s47 = sphi 0, %s47
      %s49 = sphi 0, %s47
      %s50 = sphi 0, %s49
      %s64 = sphi 0, %s50
      %s68 = sphi 0, %s68
      %s70 = sphi 0, %s68
      %s71 = sphi 0, %s70
      %s85 = sphi 0, %s71
      %s89 = sphi 0, %s89
      %s91 = sphi 0, %s89
      %s92 = sphi 0, %s91
      %s106 = sphi 0, %s92
      %s112 = sphi 0, %s114
      %s115 = sphi 0, %s112
      %s116 = sphi 0, %s115
      %s132 = sphi 0, %s116
    $region4: #{tpu_custom_call.1} parent=1 // loop_header_branch
      %16 = sbr.rel (%p14) target = $region8
    $region5: #{tpu_custom_call.1} parent=1 // loop_body
      %s18 = ssub.s32 %s13, 1
      %s19 = ssub.s32 %s13, 2
      %s20 = sadd.s32 %s13, 1
      %s21 = ssub.s32 %s13, %s20
      %p22 = scmp.eq.s32.totalorder %s21, 0
      %s24 = sadd.s32 %s23, 1
      %s25 = scalar_select %p22, %s23, %s24
      %p28 = pneg %p22
      %p29 = scmp.eq.s32.totalorder %s13, 1
      %p30 = por %p28, %p29
      %p31 = scmp.ne.s32.totalorder %s23, %s26
      %p32 = scmp.eq.s32.totalorder %s13, 0
      %p33 = por %p31, %p32
      %p34 = scmp.ne.s32.totalorder %s23, %s26
      %p35 = scmp.eq.s32.totalorder %s18, 1
      %p36 = por %p34, %p35
      %p37 = scmp.ne.s32.totalorder %s26, %s27
      %p38 = scmp.eq.s32.totalorder %s18, 0
      %p39 = por %p37, %p38
      %p40 = scmp.ne.s32.totalorder %s26, %s27
      %p41 = scmp.eq.s32.totalorder %s19, 1
      %p42 = por %p40, %p41
      %p44 = scmp.ne.s32.totalorder %s27, %s43
      %p45 = scmp.eq.s32.totalorder %s19, 0
      %p46 = por %p44, %p45
      %s48 = sadd.s32 %s47, 1
      %p51 = scmp.eq.s32.totalorder %s13, 1
      %p52 = scmp.ne.s32.totalorder %s47, %s49
      %p53 = scmp.eq.s32.totalorder %s13, 0
      %p54 = por %p52, %p53
      %p55 = scmp.ne.s32.totalorder %s47, %s49
      %p56 = scmp.eq.s32.totalorder %s18, 1
      %p57 = por %p55, %p56
      %p58 = scmp.ne.s32.totalorder %s49, %s50
      %p59 = scmp.eq.s32.totalorder %s18, 0
      %p60 = por %p58, %p59
      %p61 = scmp.ne.s32.totalorder %s49, %s50
      %p62 = scmp.eq.s32.totalorder %s19, 1
      %p63 = por %p61, %p62
      %p65 = scmp.ne.s32.totalorder %s50, %s64
      %p66 = scmp.eq.s32.totalorder %s19, 0
      %p67 = por %p65, %p66
      %s69 = sadd.s32 %s68, 1
      %p72 = scmp.eq.s32.totalorder %s13, 1
      %p73 = scmp.ne.s32.totalorder %s68, %s70
      %p74 = scmp.eq.s32.totalorder %s13, 0
      %p75 = por %p73, %p74
      %p76 = scmp.ne.s32.totalorder %s68, %s70
      %p77 = scmp.eq.s32.totalorder %s18, 1
      %p78 = por %p76, %p77
      %p79 = scmp.ne.s32.totalorder %s70, %s71
      %p80 = scmp.eq.s32.totalorder %s18, 0
      %p81 = por %p79, %p80
      %p82 = scmp.ne.s32.totalorder %s70, %s71
      %p83 = scmp.eq.s32.totalorder %s19, 1
      %p84 = por %p82, %p83
      %p86 = scmp.ne.s32.totalorder %s71, %s85
      %p87 = scmp.eq.s32.totalorder %s19, 0
      %p88 = por %p86, %p87
      %s90 = sadd.s32 %s89, 1
      %p93 = scmp.eq.s32.totalorder %s13, 1
      %p94 = scmp.ne.s32.totalorder %s89, %s91
      %p95 = scmp.eq.s32.totalorder %s13, 0
      %p96 = por %p94, %p95
      %p97 = scmp.ne.s32.totalorder %s89, %s91
      %p98 = scmp.eq.s32.totalorder %s18, 1
      %p99 = por %p97, %p98
      %p100 = scmp.ne.s32.totalorder %s91, %s92
      %p101 = scmp.eq.s32.totalorder %s18, 0
      %p102 = por %p100, %p101
      %p103 = scmp.ne.s32.totalorder %s91, %s92
      %p104 = scmp.eq.s32.totalorder %s19, 1
      %p105 = por %p103, %p104
      %p107 = scmp.ne.s32.totalorder %s92, %s106
      %p108 = scmp.eq.s32.totalorder %s19, 0
      %p109 = por %p107, %p108
      %s110 = ssub.s32 %s13, %s20
      %p111 = scmp.eq.s32.totalorder %s110, 0
      %s113 = sadd.s32 %s112, 1
      %s114 = scalar_select %p111, %s112, %s113
      %p117 = pneg %p111
      %p118 = scmp.eq.s32.totalorder %s13, 1
      %p119 = por %p117, %p118
      %p120 = scmp.ne.s32.totalorder %s112, %s115
      %p121 = scmp.eq.s32.totalorder %s13, 0
      %p122 = por %p120, %p121
      %p123 = scmp.ne.s32.totalorder %s112, %s115
      %p124 = scmp.eq.s32.totalorder %s18, 1
      %p125 = por %p123, %p124
      %p126 = scmp.ne.s32.totalorder %s115, %s116
      %p127 = scmp.eq.s32.totalorder %s18, 0
      %p128 = por %p126, %p127
      %p129 = scmp.ne.s32.totalorder %s115, %s116
      %p130 = scmp.eq.s32.totalorder %s19, 1
      %p131 = por %p129, %p130
      %p133 = scmp.ne.s32.totalorder %s116, %s132
      %p134 = scmp.eq.s32.totalorder %s19, 0
      %p135 = por %p133, %p134
      %p136 = scmp.le.s32.totalorder 1, %s13
      %p137 = scmp.lt.s32.totalorder %s13, 3
      %p138 = pnand %p136, %p137
      %p139 = pneg %p138
      // Predicated region
      $region9: #{tpu_custom_call.1} parent=5 // pred_check
        _
      $region10: #{tpu_custom_call.1} parent=5 // pred_check_branch
        %141 = sbr.rel (%p138) target = $region12
      $region11: #{tpu_custom_call.1} parent=5 // pred_region
        %s142 = ssub.s32 %s13, 1
        // Predicated region
        $region13: #{tpu_custom_call.1} parent=11 // pred_check
          %p143 = pneg %p60
        $region14: #{tpu_custom_call.1} parent=11 // pred_check_branch
          %145 = sbr.rel (%p143) target = $region16
        $region15: #{tpu_custom_call.1} parent=11 // pred_region
          _
        $region16: #{tpu_custom_call.1} parent=11 // pred_fallthru
          _
        // Predicated region
        $region17: #{tpu_custom_call.1} parent=11 // pred_check
          %p146 = pneg %p81
        $region18: #{tpu_custom_call.1} parent=11 // pred_check_branch
          %148 = sbr.rel (%p146) target = $region20
        $region19: #{tpu_custom_call.1} parent=11 // pred_region
          _
        $region20: #{tpu_custom_call.1} parent=11 // pred_fallthru
          _
        // Predicated region
        $region21: #{tpu_custom_call.1} parent=11 // pred_check
          %p149 = pneg %p102
        $region22: #{tpu_custom_call.1} parent=11 // pred_check_branch
          %151 = sbr.rel (%p149) target = $region24
        $region23: #{tpu_custom_call.1} parent=11 // pred_region
          _
        $region24: #{tpu_custom_call.1} parent=11 // pred_fallthru
          _
      $region12: #{tpu_custom_call.1} parent=5 // pred_fallthru
        _
      %p152 = scmp.lt.s32.totalorder %s13, 2
      // Predicated region
      $region25: #{tpu_custom_call.1} parent=5 // pred_check
        %p153 = pneg %p152
      $region26: #{tpu_custom_call.1} parent=5 // pred_check_branch
        %155 = sbr.rel (%p153) target = $region28
      $region27: #{tpu_custom_call.1} parent=5 // pred_region
        // Predicated region
        $region29: #{tpu_custom_call.1} parent=27 // pred_check
          %p156 = pneg %p33
        $region30: #{tpu_custom_call.1} parent=27 // pred_check_branch
          %158 = sbr.rel (%p156) target = $region32
        $region31: #{tpu_custom_call.1} parent=27 // pred_region
          %p159 = scmp.lt.s32.totalorder %s13, 1
          %s160 = scalar_select %p159, %s13, 1
          %s161 = smul.addr %s160, 4
          %s162 = scalar_lea.vmem %s0, %s161
        $region32: #{tpu_custom_call.1} parent=27 // pred_fallthru
          _
      $region28: #{tpu_custom_call.1} parent=5 // pred_fallthru
        _
      %p163 = scmp.le.s32.totalorder 1, %s13
      %p164 = scmp.lt.s32.totalorder %s13, 3
      %p165 = pnand %p163, %p164
      %p166 = pneg %p165
      // Predicated region
      $region33: #{tpu_custom_call.1} parent=5 // pred_check
        _
      $region34: #{tpu_custom_call.1} parent=5 // pred_check_branch
        %168 = sbr.rel (%p165) target = $region36
      $region35: #{tpu_custom_call.1} parent=5 // pred_region
        %s169 = ssub.s32 %s13, 1
        %p170 = scmp.lt.s32.totalorder %s18, 1
        %s171 = scalar_select %p170, %s18, 1
        %s172 = smul.addr %s171, 4
        %s173 = scalar_lea.vmem %s0, %s172
        %p174 = pneg %p39
        %p175 = pneg %p36
        %p176 = pneg %p60
        %p177 = pneg %p57
        %p178 = pneg %p81
        %p179 = pneg %p78
        %p180 = pneg %p102
        %p181 = pneg %p99
        %p182 = pneg %p128
        %p183 = pneg %p125
        %s184 = sand.u32 %s115, 1
        %s185 = scalar_lea.sflag [#allocation3], %s184
        %s186 = sand.u32 %s115, 1
        %s187 = scalar_lea.vmem [#allocation2], %s186
        %p188 = scmp.lt.s32.totalorder %s18, 1
        %s189 = scalar_select %p188, %s18, 1
        %s190 = smul.addr %s189, 4
        %s191 = scalar_lea.vmem %s0, %s190
        %v193 = vld [vmem:[%s191] sm:$0x7]
        %v194 = vld [vmem:[%s1] sm:$0xff]
        %v195 = vld [vmem:[%s1 + $0x8] sm:$0xff]
        %v196 = vld [vmem:[%s1 + $0x10] sm:$0xff]
        %v197 = vld [vmem:[%s1 + $0x18] sm:$0xff]
        %v198 = vld [vmem:[%s1 + $0x20] sm:$0xff]
        %v199 = vld [vmem:[%s1 + $0x28] sm:$0xff]
        %v200 = vld [vmem:[%s1 + $0x30] sm:$0xff]
        %v201 = vld [vmem:[%s1 + $0x38] sm:$0xff]
        %v202 = vld [vmem:[%s1 + $0x40] sm:$0xff]
        %v203 = vld [vmem:[%s1 + $0x48] sm:$0xff]
        %v204 = vld [vmem:[%s1 + $0x50] sm:$0xff]
        %v205 = vld [vmem:[%s1 + $0x58] sm:$0xff]
        %v206 = vld [vmem:[%s1 + $0x60] sm:$0xff]
        %v207 = vld [vmem:[%s1 + $0x68] sm:$0xff]
        %v208 = vld [vmem:[%s1 + $0x70] sm:$0xff]
        %v209 = vld [vmem:[%s1 + $0x78] sm:$0xff]
        %v210 = vld [vmem:[%s1 + $0x80] sm:$0xff]
        %v211 = vld [vmem:[%s1 + $0x88] sm:$0xff]
        %v212 = vld [vmem:[%s1 + $0x90] sm:$0xff]
        %v213 = vld [vmem:[%s1 + $0x98] sm:$0xff]
        %v214 = vld [vmem:[%s1 + $0xa0] sm:$0xff]
        %v215 = vld [vmem:[%s1 + $0xa8] sm:$0xff]
        %v216 = vld [vmem:[%s1 + $0xb0] sm:$0xff]
        %v217 = vld [vmem:[%s1 + $0xb8] sm:$0xff]
        %v218 = vld [vmem:[%s1 + $0xc0] sm:$0xff]
        %v219 = vld [vmem:[%s1 + $0xc8] sm:$0xff]
        %v220 = vld [vmem:[%s1 + $0xd0] sm:$0xff]
        %v221 = vld [vmem:[%s1 + $0xd8] sm:$0xff]
        %v222 = vld [vmem:[%s1 + $0xe0] sm:$0xff]
        %v223 = vld [vmem:[%s1 + $0xe8] sm:$0xff]
        %v224 = vld [vmem:[%s1 + $0xf0] sm:$0xff]
        %v225 = vld [vmem:[%s1 + $0xf8] sm:$0xff]
        %227 = vset.pattern.permute.xlu0 5
        %228 = vperm.xlu0 %227, %v194
        %v229 = vpop.permute.xlu0 %228
        %232 = vset.pattern.permute.xlu0 5
        %233 = vperm.xlu0 %232, %v195
        %v234 = vpop.permute.xlu0 %233
        %237 = vset.pattern.permute.xlu0 5
        %238 = vperm.xlu0 %237, %v196
        %v239 = vpop.permute.xlu0 %238
        %242 = vset.pattern.permute.xlu0 5
        %243 = vperm.xlu0 %242, %v197
        %v244 = vpop.permute.xlu0 %243
        %247 = vset.pattern.permute.xlu0 5
        %248 = vperm.xlu0 %247, %v198
        %v249 = vpop.permute.xlu0 %248
        %252 = vset.pattern.permute.xlu0 5
        %253 = vperm.xlu0 %252, %v199
        %v254 = vpop.permute.xlu0 %253
        %257 = vset.pattern.permute.xlu0 5
        %258 = vperm.xlu0 %257, %v200
        %v259 = vpop.permute.xlu0 %258
        %262 = vset.pattern.permute.xlu0 5
        %263 = vperm.xlu0 %262, %v201
        %v264 = vpop.permute.xlu0 %263
        %267 = vset.pattern.permute.xlu0 5
        %268 = vperm.xlu0 %267, %v202
        %v269 = vpop.permute.xlu0 %268
        %272 = vset.pattern.permute.xlu0 5
        %273 = vperm.xlu0 %272, %v203
        %v274 = vpop.permute.xlu0 %273
        %277 = vset.pattern.permute.xlu0 5
        %278 = vperm.xlu0 %277, %v204
        %v279 = vpop.permute.xlu0 %278
        %282 = vset.pattern.permute.xlu0 5
        %283 = vperm.xlu0 %282, %v205
        %v284 = vpop.permute.xlu0 %283
        %287 = vset.pattern.permute.xlu0 5
        %288 = vperm.xlu0 %287, %v206
        %v289 = vpop.permute.xlu0 %288
        %292 = vset.pattern.permute.xlu0 5
        %293 = vperm.xlu0 %292, %v207
        %v294 = vpop.permute.xlu0 %293
        %297 = vset.pattern.permute.xlu0 5
        %298 = vperm.xlu0 %297, %v208
        %v299 = vpop.permute.xlu0 %298
        %302 = vset.pattern.permute.xlu0 5
        %303 = vperm.xlu0 %302, %v209
        %v304 = vpop.permute.xlu0 %303
        %307 = vset.pattern.permute.xlu0 5
        %308 = vperm.xlu0 %307, %v210
        %v309 = vpop.permute.xlu0 %308
        %312 = vset.pattern.permute.xlu0 5
        %313 = vperm.xlu0 %312, %v211
        %v314 = vpop.permute.xlu0 %313
        %317 = vset.pattern.permute.xlu0 5
        %318 = vperm.xlu0 %317, %v212
        %v319 = vpop.permute.xlu0 %318
        %322 = vset.pattern.permute.xlu0 5
        %323 = vperm.xlu0 %322, %v213
        %v324 = vpop.permute.xlu0 %323
        %327 = vset.pattern.permute.xlu0 5
        %328 = vperm.xlu0 %327, %v214
        %v329 = vpop.permute.xlu0 %328
        %332 = vset.pattern.permute.xlu0 5
        %333 = vperm.xlu0 %332, %v215
        %v334 = vpop.permute.xlu0 %333
        %337 = vset.pattern.permute.xlu0 5
        %338 = vperm.xlu0 %337, %v216
        %v339 = vpop.permute.xlu0 %338
        %342 = vset.pattern.permute.xlu0 5
        %343 = vperm.xlu0 %342, %v217
        %v344 = vpop.permute.xlu0 %343
        %347 = vset.pattern.permute.xlu0 5
        %348 = vperm.xlu0 %347, %v218
        %v349 = vpop.permute.xlu0 %348
        %352 = vset.pattern.permute.xlu0 5
        %353 = vperm.xlu0 %352, %v219
        %v354 = vpop.permute.xlu0 %353
        %357 = vset.pattern.permute.xlu0 5
        %358 = vperm.xlu0 %357, %v220
        %v359 = vpop.permute.xlu0 %358
        %362 = vset.pattern.permute.xlu0 5
        %363 = vperm.xlu0 %362, %v221
        %v364 = vpop.permute.xlu0 %363
        %367 = vset.pattern.permute.xlu0 5
        %368 = vperm.xlu0 %367, %v222
        %v369 = vpop.permute.xlu0 %368
        %372 = vset.pattern.permute.xlu0 5
        %373 = vperm.xlu0 %372, %v223
        %v374 = vpop.permute.xlu0 %373
        %377 = vset.pattern.permute.xlu0 5
        %378 = vperm.xlu0 %377, %v224
        %v379 = vpop.permute.xlu0 %378
        %382 = vset.pattern.permute.xlu0 5
        %383 = vperm.xlu0 %382, %v225
        %v384 = vpop.permute.xlu0 %383
        %v386 = vlaneseq
        %v387 = vshrl.u32 %v386, 7
        %v388 = vsub.s32 0, %v387
        %v389 = vrot.slane %v193, %v388
        %v390 = vmul.f32 %v229, %v389
        %v391 = vmul.f32 %v234, %v389
        %v392 = vmul.f32 %v239, %v389
        %v393 = vmul.f32 %v244, %v389
        %v394 = vmul.f32 %v249, %v389
        %v395 = vmul.f32 %v254, %v389
        %v396 = vmul.f32 %v259, %v389
        %v397 = vmul.f32 %v264, %v389
        %v398 = vmul.f32 %v269, %v389
        %v399 = vmul.f32 %v274, %v389
        %v400 = vmul.f32 %v279, %v389
        %v401 = vmul.f32 %v284, %v389
        %v402 = vmul.f32 %v289, %v389
        %v403 = vmul.f32 %v294, %v389
        %v404 = vmul.f32 %v299, %v389
        %v405 = vmul.f32 %v304, %v389
        %v406 = vmul.f32 %v309, %v389
        %v407 = vmul.f32 %v314, %v389
        %v408 = vmul.f32 %v319, %v389
        %v409 = vmul.f32 %v324, %v389
        %v410 = vmul.f32 %v329, %v389
        %v411 = vmul.f32 %v334, %v389
        %v412 = vmul.f32 %v339, %v389
        %v413 = vmul.f32 %v344, %v389
        %v414 = vmul.f32 %v349, %v389
        %v415 = vmul.f32 %v354, %v389
        %v416 = vmul.f32 %v359, %v389
        %v417 = vmul.f32 %v364, %v389
        %v418 = vmul.f32 %v369, %v389
        %v419 = vmul.f32 %v374, %v389
        %v420 = vmul.f32 %v379, %v389
        %v421 = vmul.f32 %v384, %v389
        %422 = vset.pattern.permute.xlu0 6
        %423 = vperm.xlu0 %422, %v194
        %v424 = vpop.permute.xlu0 %423
        %426 = vset.pattern.permute.xlu0 6
        %427 = vperm.xlu0 %426, %v195
        %v428 = vpop.permute.xlu0 %427
        %430 = vset.pattern.permute.xlu0 6
        %431 = vperm.xlu0 %430, %v196
        %v432 = vpop.permute.xlu0 %431
        %434 = vset.pattern.permute.xlu0 6
        %435 = vperm.xlu0 %434, %v197
        %v436 = vpop.permute.xlu0 %435
        %438 = vset.pattern.permute.xlu0 6
        %439 = vperm.xlu0 %438, %v198
        %v440 = vpop.permute.xlu0 %439
        %442 = vset.pattern.permute.xlu0 6
        %443 = vperm.xlu0 %442, %v199
        %v444 = vpop.permute.xlu0 %443
        %446 = vset.pattern.permute.xlu0 6
        %447 = vperm.xlu0 %446, %v200
        %v448 = vpop.permute.xlu0 %447
        %450 = vset.pattern.permute.xlu0 6
        %451 = vperm.xlu0 %450, %v201
        %v452 = vpop.permute.xlu0 %451
        %454 = vset.pattern.permute.xlu0 6
        %455 = vperm.xlu0 %454, %v202
        %v456 = vpop.permute.xlu0 %455
        %458 = vset.pattern.permute.xlu0 6
        %459 = vperm.xlu0 %458, %v203
        %v460 = vpop.permute.xlu0 %459
        %462 = vset.pattern.permute.xlu0 6
        %463 = vperm.xlu0 %462, %v204
        %v464 = vpop.permute.xlu0 %463
        %466 = vset.pattern.permute.xlu0 6
        %467 = vperm.xlu0 %466, %v205
        %v468 = vpop.permute.xlu0 %467
        %470 = vset.pattern.permute.xlu0 6
        %471 = vperm.xlu0 %470, %v206
        %v472 = vpop.permute.xlu0 %471
        %474 = vset.pattern.permute.xlu0 6
        %475 = vperm.xlu0 %474, %v207
        %v476 = vpop.permute.xlu0 %475
        %478 = vset.pattern.permute.xlu0 6
        %479 = vperm.xlu0 %478, %v208
        %v480 = vpop.permute.xlu0 %479
        %482 = vset.pattern.permute.xlu0 6
        %483 = vperm.xlu0 %482, %v209
        %v484 = vpop.permute.xlu0 %483
        %486 = vset.pattern.permute.xlu0 6
        %487 = vperm.xlu0 %486, %v210
        %v488 = vpop.permute.xlu0 %487
        %490 = vset.pattern.permute.xlu0 6
        %491 = vperm.xlu0 %490, %v211
        %v492 = vpop.permute.xlu0 %491
        %494 = vset.pattern.permute.xlu0 6
        %495 = vperm.xlu0 %494, %v212
        %v496 = vpop.permute.xlu0 %495
        %498 = vset.pattern.permute.xlu0 6
        %499 = vperm.xlu0 %498, %v213
        %v500 = vpop.permute.xlu0 %499
        %502 = vset.pattern.permute.xlu0 6
        %503 = vperm.xlu0 %502, %v214
        %v504 = vpop.permute.xlu0 %503
        %506 = vset.pattern.permute.xlu0 6
        %507 = vperm.xlu0 %506, %v215
        %v508 = vpop.permute.xlu0 %507
        %510 = vset.pattern.permute.xlu0 6
        %511 = vperm.xlu0 %510, %v216
        %v512 = vpop.permute.xlu0 %511
        %514 = vset.pattern.permute.xlu0 6
        %515 = vperm.xlu0 %514, %v217
        %v516 = vpop.permute.xlu0 %515
        %518 = vset.pattern.permute.xlu0 6
        %519 = vperm.xlu0 %518, %v218
        %v520 = vpop.permute.xlu0 %519
        %522 = vset.pattern.permute.xlu0 6
        %523 = vperm.xlu0 %522, %v219
        %v524 = vpop.permute.xlu0 %523
        %526 = vset.pattern.permute.xlu0 6
        %527 = vperm.xlu0 %526, %v220
        %v528 = vpop.permute.xlu0 %527
        %530 = vset.pattern.permute.xlu0 6
        %531 = vperm.xlu0 %530, %v221
        %v532 = vpop.permute.xlu0 %531
        %534 = vset.pattern.permute.xlu0 6
        %535 = vperm.xlu0 %534, %v222
        %v536 = vpop.permute.xlu0 %535
        %538 = vset.pattern.permute.xlu0 6
        %539 = vperm.xlu0 %538, %v223
        %v540 = vpop.permute.xlu0 %539
        %542 = vset.pattern.permute.xlu0 6
        %543 = vperm.xlu0 %542, %v224
        %v544 = vpop.permute.xlu0 %543
        %546 = vset.pattern.permute.xlu0 6
        %547 = vperm.xlu0 %546, %v225
        %v548 = vpop.permute.xlu0 %547
        %v550 = vlaneseq
        %v551 = vshrl.u32 %v550, 7
        %v552 = vsub.s32 1, %v551
        %v553 = vrot.slane %v193, %v552
        %v554 = vmul.f32 %v424, %v553
        %v555 = vmul.f32 %v428, %v553
        %v556 = vmul.f32 %v432, %v553
        %v557 = vmul.f32 %v436, %v553
        %v558 = vmul.f32 %v440, %v553
        %v559 = vmul.f32 %v444, %v553
        %v560 = vmul.f32 %v448, %v553
        %v561 = vmul.f32 %v452, %v553
        %v562 = vmul.f32 %v456, %v553
        %v563 = vmul.f32 %v460, %v553
        %v564 = vmul.f32 %v464, %v553
        %v565 = vmul.f32 %v468, %v553
        %v566 = vmul.f32 %v472, %v553
        %v567 = vmul.f32 %v476, %v553
        %v568 = vmul.f32 %v480, %v553
        %v569 = vmul.f32 %v484, %v553
        %v570 = vmul.f32 %v488, %v553
        %v571 = vmul.f32 %v492, %v553
        %v572 = vmul.f32 %v496, %v553
        %v573 = vmul.f32 %v500, %v553
        %v574 = vmul.f32 %v504, %v553
        %v575 = vmul.f32 %v508, %v553
        %v576 = vmul.f32 %v512, %v553
        %v577 = vmul.f32 %v516, %v553
        %v578 = vmul.f32 %v520, %v553
        %v579 = vmul.f32 %v524, %v553
        %v580 = vmul.f32 %v528, %v553
        %v581 = vmul.f32 %v532, %v553
        %v582 = vmul.f32 %v536, %v553
        %v583 = vmul.f32 %v540, %v553
        %v584 = vmul.f32 %v544, %v553
        %v585 = vmul.f32 %v548, %v553
        %v586 = vadd.f32 %v390, %v554
        %v587 = vadd.f32 %v391, %v555
        %v588 = vadd.f32 %v392, %v556
        %v589 = vadd.f32 %v393, %v557
        %v590 = vadd.f32 %v394, %v558
        %v591 = vadd.f32 %v395, %v559
        %v592 = vadd.f32 %v396, %v560
        %v593 = vadd.f32 %v397, %v561
        %v594 = vadd.f32 %v398, %v562
        %v595 = vadd.f32 %v399, %v563
        %v596 = vadd.f32 %v400, %v564
        %v597 = vadd.f32 %v401, %v565
        %v598 = vadd.f32 %v402, %v566
        %v599 = vadd.f32 %v403, %v567
        %v600 = vadd.f32 %v404, %v568
        %v601 = vadd.f32 %v405, %v569
        %v602 = vadd.f32 %v406, %v570
        %v603 = vadd.f32 %v407, %v571
        %v604 = vadd.f32 %v408, %v572
        %v605 = vadd.f32 %v409, %v573
        %v606 = vadd.f32 %v410, %v574
        %v607 = vadd.f32 %v411, %v575
        %v608 = vadd.f32 %v412, %v576
        %v609 = vadd.f32 %v413, %v577
        %v610 = vadd.f32 %v414, %v578
        %v611 = vadd.f32 %v415, %v579
        %v612 = vadd.f32 %v416, %v580
        %v613 = vadd.f32 %v417, %v581
        %v614 = vadd.f32 %v418, %v582
        %v615 = vadd.f32 %v419, %v583
        %v616 = vadd.f32 %v420, %v584
        %v617 = vadd.f32 %v421, %v585
        %618 = vset.pattern.permute.xlu0 7
        %619 = vperm.xlu0 %618, %v194
        %v620 = vpop.permute.xlu0 %619
        %622 = vset.pattern.permute.xlu0 7
        %623 = vperm.xlu0 %622, %v195
        %v624 = vpop.permute.xlu0 %623
        %626 = vset.pattern.permute.xlu0 7
        %627 = vperm.xlu0 %626, %v196
        %v628 = vpop.permute.xlu0 %627
        %630 = vset.pattern.permute.xlu0 7
        %631 = vperm.xlu0 %630, %v197
        %v632 = vpop.permute.xlu0 %631
        %634 = vset.pattern.permute.xlu0 7
        %635 = vperm.xlu0 %634, %v198
        %v636 = vpop.permute.xlu0 %635
        %638 = vset.pattern.permute.xlu0 7
        %639 = vperm.xlu0 %638, %v199
        %v640 = vpop.permute.xlu0 %639
        %642 = vset.pattern.permute.xlu0 7
        %643 = vperm.xlu0 %642, %v200
        %v644 = vpop.permute.xlu0 %643
        %646 = vset.pattern.permute.xlu0 7
        %647 = vperm.xlu0 %646, %v201
        %v648 = vpop.permute.xlu0 %647
        %650 = vset.pattern.permute.xlu0 7
        %651 = vperm.xlu0 %650, %v202
        %v652 = vpop.permute.xlu0 %651
        %654 = vset.pattern.permute.xlu0 7
        %655 = vperm.xlu0 %654, %v203
        %v656 = vpop.permute.xlu0 %655
        %658 = vset.pattern.permute.xlu0 7
        %659 = vperm.xlu0 %658, %v204
        %v660 = vpop.permute.xlu0 %659
        %662 = vset.pattern.permute.xlu0 7
        %663 = vperm.xlu0 %662, %v205
        %v664 = vpop.permute.xlu0 %663
        %666 = vset.pattern.permute.xlu0 7
        %667 = vperm.xlu0 %666, %v206
        %v668 = vpop.permute.xlu0 %667
        %670 = vset.pattern.permute.xlu0 7
        %671 = vperm.xlu0 %670, %v207
        %v672 = vpop.permute.xlu0 %671
        %674 = vset.pattern.permute.xlu0 7
        %675 = vperm.xlu0 %674, %v208
        %v676 = vpop.permute.xlu0 %675
        %678 = vset.pattern.permute.xlu0 7
        %679 = vperm.xlu0 %678, %v209
        %v680 = vpop.permute.xlu0 %679
        %682 = vset.pattern.permute.xlu0 7
        %683 = vperm.xlu0 %682, %v210
        %v684 = vpop.permute.xlu0 %683
        %686 = vset.pattern.permute.xlu0 7
        %687 = vperm.xlu0 %686, %v211
        %v688 = vpop.permute.xlu0 %687
        %690 = vset.pattern.permute.xlu0 7
        %691 = vperm.xlu0 %690, %v212
        %v692 = vpop.permute.xlu0 %691
        %694 = vset.pattern.permute.xlu0 7
        %695 = vperm.xlu0 %694, %v213
        %v696 = vpop.permute.xlu0 %695
        %698 = vset.pattern.permute.xlu0 7
        %699 = vperm.xlu0 %698, %v214
        %v700 = vpop.permute.xlu0 %699
        %702 = vset.pattern.permute.xlu0 7
        %703 = vperm.xlu0 %702, %v215
        %v704 = vpop.permute.xlu0 %703
        %706 = vset.pattern.permute.xlu0 7
        %707 = vperm.xlu0 %706, %v216
        %v708 = vpop.permute.xlu0 %707
        %710 = vset.pattern.permute.xlu0 7
        %711 = vperm.xlu0 %710, %v217
        %v712 = vpop.permute.xlu0 %711
        %714 = vset.pattern.permute.xlu0 7
        %715 = vperm.xlu0 %714, %v218
        %v716 = vpop.permute.xlu0 %715
        %718 = vset.pattern.permute.xlu0 7
        %719 = vperm.xlu0 %718, %v219
        %v720 = vpop.permute.xlu0 %719
        %722 = vset.pattern.permute.xlu0 7
        %723 = vperm.xlu0 %722, %v220
        %v724 = vpop.permute.xlu0 %723
        %726 = vset.pattern.permute.xlu0 7
        %727 = vperm.xlu0 %726, %v221
        %v728 = vpop.permute.xlu0 %727
        %730 = vset.pattern.permute.xlu0 7
        %731 = vperm.xlu0 %730, %v222
        %v732 = vpop.permute.xlu0 %731
        %734 = vset.pattern.permute.xlu0 7
        %735 = vperm.xlu0 %734, %v223
        %v736 = vpop.permute.xlu0 %735
        %738 = vset.pattern.permute.xlu0 7
        %739 = vperm.xlu0 %738, %v224
        %v740 = vpop.permute.xlu0 %739
        %742 = vset.pattern.permute.xlu0 7
        %743 = vperm.xlu0 %742, %v225
        %v744 = vpop.permute.xlu0 %743
        %v746 = vlaneseq
        %v747 = vshrl.u32 %v746, 7
        %v748 = vsub.s32 2, %v747
        %v749 = vrot.slane %v193, %v748
        %v750 = vmul.f32 %v620, %v749
        %v751 = vmul.f32 %v624, %v749
        %v752 = vmul.f32 %v628, %v749
        %v753 = vmul.f32 %v632, %v749
        %v754 = vmul.f32 %v636, %v749
        %v755 = vmul.f32 %v640, %v749
        %v756 = vmul.f32 %v644, %v749
        %v757 = vmul.f32 %v648, %v749
        %v758 = vmul.f32 %v652, %v749
        %v759 = vmul.f32 %v656, %v749
        %v760 = vmul.f32 %v660, %v749
        %v761 = vmul.f32 %v664, %v749
        %v762 = vmul.f32 %v668, %v749
        %v763 = vmul.f32 %v672, %v749
        %v764 = vmul.f32 %v676, %v749
        %v765 = vmul.f32 %v680, %v749
        %v766 = vmul.f32 %v684, %v749
        %v767 = vmul.f32 %v688, %v749
        %v768 = vmul.f32 %v692, %v749
        %v769 = vmul.f32 %v696, %v749
        %v770 = vmul.f32 %v700, %v749
        %v771 = vmul.f32 %v704, %v749
        %v772 = vmul.f32 %v708, %v749
        %v773 = vmul.f32 %v712, %v749
        %v774 = vmul.f32 %v716, %v749
        %v775 = vmul.f32 %v720, %v749
        %v776 = vmul.f32 %v724, %v749
        %v777 = vmul.f32 %v728, %v749
        %v778 = vmul.f32 %v732, %v749
        %v779 = vmul.f32 %v736, %v749
        %v780 = vmul.f32 %v740, %v749
        %v781 = vmul.f32 %v744, %v749
        %v782 = vadd.f32 %v586, %v750
        %v783 = vadd.f32 %v587, %v751
        %v784 = vadd.f32 %v588, %v752
        %v785 = vadd.f32 %v589, %v753
        %v786 = vadd.f32 %v590, %v754
        %v787 = vadd.f32 %v591, %v755
        %v788 = vadd.f32 %v592, %v756
        %v789 = vadd.f32 %v593, %v757
        %v790 = vadd.f32 %v594, %v758
        %v791 = vadd.f32 %v595, %v759
        %v792 = vadd.f32 %v596, %v760
        %v793 = vadd.f32 %v597, %v761
        %v794 = vadd.f32 %v598, %v762
        %v795 = vadd.f32 %v599, %v763
        %v796 = vadd.f32 %v600, %v764
        %v797 = vadd.f32 %v601, %v765
        %v798 = vadd.f32 %v602, %v766
        %v799 = vadd.f32 %v603, %v767
        %v800 = vadd.f32 %v604, %v768
        %v801 = vadd.f32 %v605, %v769
        %v802 = vadd.f32 %v606, %v770
        %v803 = vadd.f32 %v607, %v771
        %v804 = vadd.f32 %v608, %v772
        %v805 = vadd.f32 %v609, %v773
        %v806 = vadd.f32 %v610, %v774
        %v807 = vadd.f32 %v611, %v775
        %v808 = vadd.f32 %v612, %v776
        %v809 = vadd.f32 %v613, %v777
        %v810 = vadd.f32 %v614, %v778
        %v811 = vadd.f32 %v615, %v779
        %v812 = vadd.f32 %v616, %v780
        %v813 = vadd.f32 %v617, %v781
        %814 = vset.pattern.permute.xlu0 0
        %815 = vperm.xlu0 %814, %v194
        %v816 = vpop.permute.xlu0 %815
        %818 = vset.pattern.permute.xlu0 0
        %819 = vperm.xlu0 %818, %v195
        %v820 = vpop.permute.xlu0 %819
        %822 = vset.pattern.permute.xlu0 0
        %823 = vperm.xlu0 %822, %v196
        %v824 = vpop.permute.xlu0 %823
        %826 = vset.pattern.permute.xlu0 0
        %827 = vperm.xlu0 %826, %v197
        %v828 = vpop.permute.xlu0 %827
        %830 = vset.pattern.permute.xlu0 0
        %831 = vperm.xlu0 %830, %v198
        %v832 = vpop.permute.xlu0 %831
        %834 = vset.pattern.permute.xlu0 0
        %835 = vperm.xlu0 %834, %v199
        %v836 = vpop.permute.xlu0 %835
        %838 = vset.pattern.permute.xlu0 0
        %839 = vperm.xlu0 %838, %v200
        %v840 = vpop.permute.xlu0 %839
        %842 = vset.pattern.permute.xlu0 0
        %843 = vperm.xlu0 %842, %v201
        %v844 = vpop.permute.xlu0 %843
        %846 = vset.pattern.permute.xlu0 0
        %847 = vperm.xlu0 %846, %v202
        %v848 = vpop.permute.xlu0 %847
        %850 = vset.pattern.permute.xlu0 0
        %851 = vperm.xlu0 %850, %v203
        %v852 = vpop.permute.xlu0 %851
        %854 = vset.pattern.permute.xlu0 0
        %855 = vperm.xlu0 %854, %v204
        %v856 = vpop.permute.xlu0 %855
        %858 = vset.pattern.permute.xlu0 0
        %859 = vperm.xlu0 %858, %v205
        %v860 = vpop.permute.xlu0 %859
        %862 = vset.pattern.permute.xlu0 0
        %863 = vperm.xlu0 %862, %v206
        %v864 = vpop.permute.xlu0 %863
        %866 = vset.pattern.permute.xlu0 0
        %867 = vperm.xlu0 %866, %v207
        %v868 = vpop.permute.xlu0 %867
        %870 = vset.pattern.permute.xlu0 0
        %871 = vperm.xlu0 %870, %v208
        %v872 = vpop.permute.xlu0 %871
        %874 = vset.pattern.permute.xlu0 0
        %875 = vperm.xlu0 %874, %v209
        %v876 = vpop.permute.xlu0 %875
        %878 = vset.pattern.permute.xlu0 0
        %879 = vperm.xlu0 %878, %v210
        %v880 = vpop.permute.xlu0 %879
        %882 = vset.pattern.permute.xlu0 0
        %883 = vperm.xlu0 %882, %v211
        %v884 = vpop.permute.xlu0 %883
        %886 = vset.pattern.permute.xlu0 0
        %887 = vperm.xlu0 %886, %v212
        %v888 = vpop.permute.xlu0 %887
        %890 = vset.pattern.permute.xlu0 0
        %891 = vperm.xlu0 %890, %v213
        %v892 = vpop.permute.xlu0 %891
        %894 = vset.pattern.permute.xlu0 0
        %895 = vperm.xlu0 %894, %v214
        %v896 = vpop.permute.xlu0 %895
        %898 = vset.pattern.permute.xlu0 0
        %899 = vperm.xlu0 %898, %v215
        %v900 = vpop.permute.xlu0 %899
        %902 = vset.pattern.permute.xlu0 0
        %903 = vperm.xlu0 %902, %v216
        %v904 = vpop.permute.xlu0 %903
        %906 = vset.pattern.permute.xlu0 0
        %907 = vperm.xlu0 %906, %v217
        %v908 = vpop.permute.xlu0 %907
        %910 = vset.pattern.permute.xlu0 0
        %911 = vperm.xlu0 %910, %v218
        %v912 = vpop.permute.xlu0 %911
        %914 = vset.pattern.permute.xlu0 0
        %915 = vperm.xlu0 %914, %v219
        %v916 = vpop.permute.xlu0 %915
        %918 = vset.pattern.permute.xlu0 0
        %919 = vperm.xlu0 %918, %v220
        %v920 = vpop.permute.xlu0 %919
        %922 = vset.pattern.permute.xlu0 0
        %923 = vperm.xlu0 %922, %v221
        %v924 = vpop.permute.xlu0 %923
        %926 = vset.pattern.permute.xlu0 0
        %927 = vperm.xlu0 %926, %v222
        %v928 = vpop.permute.xlu0 %927
        %930 = vset.pattern.permute.xlu0 0
        %931 = vperm.xlu0 %930, %v223
        %v932 = vpop.permute.xlu0 %931
        %934 = vset.pattern.permute.xlu0 0
        %935 = vperm.xlu0 %934, %v224
        %v936 = vpop.permute.xlu0 %935
        %938 = vset.pattern.permute.xlu0 0
        %939 = vperm.xlu0 %938, %v225
        %v940 = vpop.permute.xlu0 %939
        %v942 = vadd.f32 %v782, %v816
        %v943 = vadd.f32 %v783, %v820
        %v944 = vadd.f32 %v784, %v824
        %v945 = vadd.f32 %v785, %v828
        %v946 = vadd.f32 %v786, %v832
        %v947 = vadd.f32 %v787, %v836
        %v948 = vadd.f32 %v788, %v840
        %v949 = vadd.f32 %v789, %v844
        %v950 = vadd.f32 %v790, %v848
        %v951 = vadd.f32 %v791, %v852
        %v952 = vadd.f32 %v792, %v856
        %v953 = vadd.f32 %v793, %v860
        %v954 = vadd.f32 %v794, %v864
        %v955 = vadd.f32 %v795, %v868
        %v956 = vadd.f32 %v796, %v872
        %v957 = vadd.f32 %v797, %v876
        %v958 = vadd.f32 %v798, %v880
        %v959 = vadd.f32 %v799, %v884
        %v960 = vadd.f32 %v800, %v888
        %v961 = vadd.f32 %v801, %v892
        %v962 = vadd.f32 %v802, %v896
        %v963 = vadd.f32 %v803, %v900
        %v964 = vadd.f32 %v804, %v904
        %v965 = vadd.f32 %v805, %v908
        %v966 = vadd.f32 %v806, %v912
        %v967 = vadd.f32 %v807, %v916
        %v968 = vadd.f32 %v808, %v920
        %v969 = vadd.f32 %v809, %v924
        %v970 = vadd.f32 %v810, %v928
        %v971 = vadd.f32 %v811, %v932
        %v972 = vadd.f32 %v812, %v936
        %v973 = vadd.f32 %v813, %v940
        %v974 = vmax.f32 %v942, 0.0
        %v975 = vmax.f32 %v943, 0.0
        %v976 = vmax.f32 %v944, 0.0
        %v977 = vmax.f32 %v945, 0.0
        %v978 = vmax.f32 %v946, 0.0
        %v979 = vmax.f32 %v947, 0.0
        %v980 = vmax.f32 %v948, 0.0
        %v981 = vmax.f32 %v949, 0.0
        %v982 = vmax.f32 %v950, 0.0
        %v983 = vmax.f32 %v951, 0.0
        %v984 = vmax.f32 %v952, 0.0
        %v985 = vmax.f32 %v953, 0.0
        %v986 = vmax.f32 %v954, 0.0
        %v987 = vmax.f32 %v955, 0.0
        %v988 = vmax.f32 %v956, 0.0
        %v989 = vmax.f32 %v957, 0.0
        %v990 = vmax.f32 %v958, 0.0
        %v991 = vmax.f32 %v959, 0.0
        %v992 = vmax.f32 %v960, 0.0
        %v993 = vmax.f32 %v961, 0.0
        %v994 = vmax.f32 %v962, 0.0
        %v995 = vmax.f32 %v963, 0.0
        %v996 = vmax.f32 %v964, 0.0
        %v997 = vmax.f32 %v965, 0.0
        %v998 = vmax.f32 %v966, 0.0
        %v999 = vmax.f32 %v967, 0.0
        %v1000 = vmax.f32 %v968, 0.0
        %v1001 = vmax.f32 %v969, 0.0
        %v1002 = vmax.f32 %v970, 0.0
        %v1003 = vmax.f32 %v971, 0.0
        %v1004 = vmax.f32 %v972, 0.0
        %v1005 = vmax.f32 %v973, 0.0
        %v1006 = vld [vmem:[%s2] sm:$0xff]
        %v1007 = vld [vmem:[%s2 + $0x8] sm:$0xff]
        %v1008 = vld [vmem:[%s2 + $0x10] sm:$0xff]
        %v1009 = vld [vmem:[%s2 + $0x18] sm:$0xff]
        %v1010 = vld [vmem:[%s2 + $0x20] sm:$0xff]
        %v1011 = vld [vmem:[%s2 + $0x28] sm:$0xff]
        %v1012 = vld [vmem:[%s2 + $0x30] sm:$0xff]
        %v1013 = vld [vmem:[%s2 + $0x38] sm:$0xff]
        %v1014 = vld [vmem:[%s2 + $0x40] sm:$0xff]
        %v1015 = vld [vmem:[%s2 + $0x48] sm:$0xff]
        %v1016 = vld [vmem:[%s2 + $0x50] sm:$0xff]
        %v1017 = vld [vmem:[%s2 + $0x58] sm:$0xff]
        %v1018 = vld [vmem:[%s2 + $0x60] sm:$0xff]
        %v1019 = vld [vmem:[%s2 + $0x68] sm:$0xff]
        %v1020 = vld [vmem:[%s2 + $0x70] sm:$0xff]
        %v1021 = vld [vmem:[%s2 + $0x78] sm:$0xff]
        %v1022 = vpack.c.bf16 %v975, %v974
        %v1023 = vpack.c.bf16 %v977, %v976
        %v1024 = vpack.c.bf16 %v979, %v978
        %v1025 = vpack.c.bf16 %v981, %v980
        %v1026 = vpack.c.bf16 %v983, %v982
        %v1027 = vpack.c.bf16 %v985, %v984
        %v1028 = vpack.c.bf16 %v987, %v986
        %v1029 = vpack.c.bf16 %v989, %v988
        %v1030 = vpack.c.bf16 %v991, %v990
        %v1031 = vpack.c.bf16 %v993, %v992
        %v1032 = vpack.c.bf16 %v995, %v994
        %v1033 = vpack.c.bf16 %v997, %v996
        %v1034 = vpack.c.bf16 %v999, %v998
        %v1035 = vpack.c.bf16 %v1001, %v1000
        %v1036 = vpack.c.bf16 %v1003, %v1002
        %v1037 = vpack.c.bf16 %v1005, %v1004
        %1038 = vset.pattern.permute.xlu0 1
        %1039 = vperm.xlu0 %1038, %v194
        %v1040 = vpop.permute.xlu0 %1039
        %1042 = vset.pattern.permute.xlu0 1
        %1043 = vperm.xlu0 %1042, %v195
        %v1044 = vpop.permute.xlu0 %1043
        %1046 = vset.pattern.permute.xlu0 1
        %1047 = vperm.xlu0 %1046, %v196
        %v1048 = vpop.permute.xlu0 %1047
        %1050 = vset.pattern.permute.xlu0 1
        %1051 = vperm.xlu0 %1050, %v197
        %v1052 = vpop.permute.xlu0 %1051
        %1054 = vset.pattern.permute.xlu0 1
        %1055 = vperm.xlu0 %1054, %v198
        %v1056 = vpop.permute.xlu0 %1055
        %1058 = vset.pattern.permute.xlu0 1
        %1059 = vperm.xlu0 %1058, %v199
        %v1060 = vpop.permute.xlu0 %1059
        %1062 = vset.pattern.permute.xlu0 1
        %1063 = vperm.xlu0 %1062, %v200
        %v1064 = vpop.permute.xlu0 %1063
        %1066 = vset.pattern.permute.xlu0 1
        %1067 = vperm.xlu0 %1066, %v201
        %v1068 = vpop.permute.xlu0 %1067
        %1070 = vset.pattern.permute.xlu0 1
        %1071 = vperm.xlu0 %1070, %v202
        %v1072 = vpop.permute.xlu0 %1071
        %1074 = vset.pattern.permute.xlu0 1
        %1075 = vperm.xlu0 %1074, %v203
        %v1076 = vpop.permute.xlu0 %1075
        %1078 = vset.pattern.permute.xlu0 1
        %1079 = vperm.xlu0 %1078, %v204
        %v1080 = vpop.permute.xlu0 %1079
        %1082 = vset.pattern.permute.xlu0 1
        %1083 = vperm.xlu0 %1082, %v205
        %v1084 = vpop.permute.xlu0 %1083
        %1086 = vset.pattern.permute.xlu0 1
        %1087 = vperm.xlu0 %1086, %v206
        %v1088 = vpop.permute.xlu0 %1087
        %1090 = vset.pattern.permute.xlu0 1
        %1091 = vperm.xlu0 %1090, %v207
        %v1092 = vpop.permute.xlu0 %1091
        %1094 = vset.pattern.permute.xlu0 1
        %1095 = vperm.xlu0 %1094, %v208
        %v1096 = vpop.permute.xlu0 %1095
        %1098 = vset.pattern.permute.xlu0 1
        %1099 = vperm.xlu0 %1098, %v209
        %v1100 = vpop.permute.xlu0 %1099
        %v1118 = vunpack.c.l.b16 %v1006
        %v1119 = vunpack.c.h.b16 %v1006
        %v1120 = vunpack.c.l.b16 %v1007
        %v1121 = vunpack.c.h.b16 %v1007
        %v1122 = vunpack.c.l.b16 %v1008
        %v1123 = vunpack.c.h.b16 %v1008
        %v1124 = vunpack.c.l.b16 %v1009
        %v1125 = vunpack.c.h.b16 %v1009
        %v1126 = vunpack.c.l.b16 %v1010
        %v1127 = vunpack.c.h.b16 %v1010
        %v1128 = vunpack.c.l.b16 %v1011
        %v1129 = vunpack.c.h.b16 %v1011
        %v1130 = vunpack.c.l.b16 %v1012
        %v1131 = vunpack.c.h.b16 %v1012
        %v1132 = vunpack.c.l.b16 %v1013
        %v1133 = vunpack.c.h.b16 %v1013
        %v1134 = vunpack.c.l.b16 %v1014
        %v1135 = vunpack.c.h.b16 %v1014
        %v1136 = vunpack.c.l.b16 %v1015
        %v1137 = vunpack.c.h.b16 %v1015
        %v1138 = vunpack.c.l.b16 %v1016
        %v1139 = vunpack.c.h.b16 %v1016
        %v1140 = vunpack.c.l.b16 %v1017
        %v1141 = vunpack.c.h.b16 %v1017
        %v1142 = vunpack.c.l.b16 %v1018
        %v1143 = vunpack.c.h.b16 %v1018
        %v1144 = vunpack.c.l.b16 %v1019
        %v1145 = vunpack.c.h.b16 %v1019
        %v1146 = vunpack.c.l.b16 %v1020
        %v1147 = vunpack.c.h.b16 %v1020
        %v1148 = vunpack.c.l.b16 %v1021
        %v1149 = vunpack.c.h.b16 %v1021
        %v1150 = vpack.c.b16 %v1120, %v1118
        %v1151 = vpack.c.b16 %v1121, %v1119
        %v1152 = vpack.c.b16 %v1124, %v1122
        %v1153 = vpack.c.b16 %v1125, %v1123
        %v1154 = vpack.c.b16 %v1128, %v1126
        %v1155 = vpack.c.b16 %v1129, %v1127
        %v1156 = vpack.c.b16 %v1132, %v1130
        %v1157 = vpack.c.b16 %v1133, %v1131
        %v1158 = vpack.c.b16 %v1136, %v1134
        %v1159 = vpack.c.b16 %v1137, %v1135
        %v1160 = vpack.c.b16 %v1140, %v1138
        %v1161 = vpack.c.b16 %v1141, %v1139
        %v1162 = vpack.c.b16 %v1144, %v1142
        %v1163 = vpack.c.b16 %v1145, %v1143
        %v1164 = vpack.c.b16 %v1148, %v1146
        %v1165 = vpack.c.b16 %v1149, %v1147
        %1182 = vmatprep.subr.bf16.mxu0 0
        %1183 = vmatpush1.bf16.msra.mxu0 %v1029
        %1184 = vmatprep.subr.bf16.mxu0 0
        %1185 = vmatpush1.bf16.msra.mxu0 %v1028
        %1186 = vmatprep.subr.bf16.mxu0 0
        %1187 = vmatpush1.bf16.msra.mxu0 %v1027
        %1188 = vmatprep.subr.bf16.mxu0 0
        %1189 = vmatpush1.bf16.msra.mxu0 %v1026
        %1190 = vmatprep.subr.bf16.mxu0 0
        %1191 = vmatpush1.bf16.msra.mxu0 %v1025
        %1192 = vmatprep.subr.bf16.mxu0 0
        %1193 = vmatpush1.bf16.msra.mxu0 %v1024
        %1194 = vmatprep.subr.bf16.mxu0 0
        %1195 = vmatpush1.bf16.msra.mxu0 %v1023
        %1196 = vmatprep.subr.bf16.mxu0 0
        %1197 = vmatpush1.bf16.msra.mxu0 %v1022
        %1198 = vmatprep.subr.bf16.mxu0 0
        %1199 = vmatpush2.bf16.msra.mxu0 %v1037
        %1200 = vmatprep.subr.bf16.mxu0 0
        %1201 = vmatpush2.bf16.msra.mxu0 %v1036
        %1202 = vmatprep.subr.bf16.mxu0 0
        %1203 = vmatpush2.bf16.msra.mxu0 %v1035
        %1204 = vmatprep.subr.bf16.mxu0 0
        %1205 = vmatpush2.bf16.msra.mxu0 %v1034
        %1206 = vmatprep.subr.bf16.mxu0 0
        %1207 = vmatpush2.bf16.msra.mxu0 %v1033
        %1208 = vmatprep.subr.bf16.mxu0 0
        %1209 = vmatpush2.bf16.msra.mxu0 %v1032
        %1210 = vmatprep.subr.bf16.mxu0 0
        %1211 = vmatpush2.bf16.msra.mxu0 %v1031
        %1212 = vmatprep.subr.bf16.mxu0 0
        %1213 = vmatpush2.bf16.msra.mxu0 %v1030
        %1214 = vmatprep.mubr.bf16.mxu0 %v1151
        %1215 = vmatmul.mubr.bf16.gmra.mxu0 %v1150
        %v1216 = vpop.f32.mrf.mxu0
        %v1217 = vadd.f32 %v1040, %v1216
        %v1218 = vpop.f32.mrf.mxu0
        %v1219 = vpop.f32.mrf.mxu0
        %v1220 = vadd.f32 %v1044, %v1219
        %v1221 = vpop.f32.mrf.mxu0
        %1222 = vmatprep.mubr.bf16.mxu0 %v1153
        %1223 = vmatmul.mubr.bf16.gmra.mxu0 %v1152
        %v1224 = vpop.f32.mrf.mxu0
        %v1225 = vadd.f32 %v1048, %v1224
        %v1226 = vpop.f32.mrf.mxu0
        %v1227 = vpop.f32.mrf.mxu0
        %v1228 = vadd.f32 %v1052, %v1227
        %v1229 = vpop.f32.mrf.mxu0
        %1230 = vmatprep.mubr.bf16.mxu0 %v1155
        %1231 = vmatmul.mubr.bf16.gmra.mxu0 %v1154
        %v1232 = vpop.f32.mrf.mxu0
        %v1233 = vadd.f32 %v1056, %v1232
        %v1234 = vpop.f32.mrf.mxu0
        %v1235 = vpop.f32.mrf.mxu0
        %v1236 = vadd.f32 %v1060, %v1235
        %v1237 = vpop.f32.mrf.mxu0
        %1238 = vmatprep.mubr.bf16.mxu0 %v1157
        %1239 = vmatmul.mubr.bf16.gmra.mxu0 %v1156
        %v1240 = vpop.f32.mrf.mxu0
        %v1241 = vadd.f32 %v1064, %v1240
        %v1242 = vpop.f32.mrf.mxu0
        %v1243 = vpop.f32.mrf.mxu0
        %v1244 = vadd.f32 %v1068, %v1243
        %v1245 = vpop.f32.mrf.mxu0
        %1246 = vmatprep.mubr.bf16.mxu0 %v1159
        %1247 = vmatmul.mubr.bf16.gmra.mxu0 %v1158
        %v1248 = vpop.f32.mrf.mxu0
        %v1249 = vadd.f32 %v1072, %v1248
        %v1250 = vpop.f32.mrf.mxu0
        %v1251 = vpop.f32.mrf.mxu0
        %v1252 = vadd.f32 %v1076, %v1251
        %v1253 = vpop.f32.mrf.mxu0
        %1254 = vmatprep.mubr.bf16.mxu0 %v1161
        %1255 = vmatmul.mubr.bf16.gmra.mxu0 %v1160
        %v1256 = vpop.f32.mrf.mxu0
        %v1257 = vadd.f32 %v1080, %v1256
        %v1258 = vpop.f32.mrf.mxu0
        %v1259 = vpop.f32.mrf.mxu0
        %v1260 = vadd.f32 %v1084, %v1259
        %v1261 = vpop.f32.mrf.mxu0
        %1262 = vmatprep.mubr.bf16.mxu0 %v1163
        %1263 = vmatmul.mubr.bf16.gmra.mxu0 %v1162
        %v1264 = vpop.f32.mrf.mxu0
        %v1265 = vadd.f32 %v1088, %v1264
        %v1266 = vpop.f32.mrf.mxu0
        %v1267 = vpop.f32.mrf.mxu0
        %v1268 = vadd.f32 %v1092, %v1267
        %v1269 = vpop.f32.mrf.mxu0
        %1270 = vmatprep.mubr.bf16.mxu0 %v1165
        %1271 = vmatmul.mubr.bf16.gmra.mxu0 %v1164
        %v1272 = vpop.f32.mrf.mxu0
        %v1273 = vadd.f32 %v1096, %v1272
        %v1274 = vpop.f32.mrf.mxu0
        %v1275 = vpop.f32.mrf.mxu0
        %v1276 = vadd.f32 %v1100, %v1275
        %v1277 = vpop.f32.mrf.mxu0
        %1278 = vdwg.mxu0
        %v1279 = vmax.f32 %v1217, 0.0
        %v1280 = vmax.f32 %v1220, 0.0
        %v1281 = vmax.f32 %v1225, 0.0
        %v1282 = vmax.f32 %v1228, 0.0
        %v1283 = vmax.f32 %v1233, 0.0
        %v1284 = vmax.f32 %v1236, 0.0
        %v1285 = vmax.f32 %v1241, 0.0
        %v1286 = vmax.f32 %v1244, 0.0
        %v1287 = vmax.f32 %v1249, 0.0
        %v1288 = vmax.f32 %v1252, 0.0
        %v1289 = vmax.f32 %v1257, 0.0
        %v1290 = vmax.f32 %v1260, 0.0
        %v1291 = vmax.f32 %v1265, 0.0
        %v1292 = vmax.f32 %v1268, 0.0
        %v1293 = vmax.f32 %v1273, 0.0
        %v1294 = vmax.f32 %v1276, 0.0
        %v1295 = vld [vmem:[%s3] sm:$0xf]
        %v1296 = vld [vmem:[%s3 + $0x4] sm:$0xf]
        %v1297 = vld [vmem:[%s3 + $0x8] sm:$0xf]
        %v1298 = vld [vmem:[%s3 + $0xc] sm:$0xf]
        %v1299 = vld [vmem:[%s3 + $0x10] sm:$0xf]
        %v1300 = vld [vmem:[%s3 + $0x14] sm:$0xf]
        %v1301 = vld [vmem:[%s3 + $0x18] sm:$0xf]
        %v1302 = vld [vmem:[%s3 + $0x1c] sm:$0xf]
        %v1303 = vld [vmem:[%s3 + $0x20] sm:$0xf]
        %v1304 = vld [vmem:[%s3 + $0x24] sm:$0xf]
        %v1305 = vld [vmem:[%s3 + $0x28] sm:$0xf]
        %v1306 = vld [vmem:[%s3 + $0x2c] sm:$0xf]
        %v1307 = vld [vmem:[%s3 + $0x30] sm:$0xf]
        %v1308 = vld [vmem:[%s3 + $0x34] sm:$0xf]
        %v1309 = vld [vmem:[%s3 + $0x38] sm:$0xf]
        %v1310 = vld [vmem:[%s3 + $0x3c] sm:$0xf]
        %v1311 = vpack.c.bf16 %v1280, %v1279
        %v1312 = vpack.c.bf16 %v1282, %v1281
        %v1313 = vpack.c.bf16 %v1284, %v1283
        %v1314 = vpack.c.bf16 %v1286, %v1285
        %v1315 = vpack.c.bf16 %v1288, %v1287
        %v1316 = vpack.c.bf16 %v1290, %v1289
        %v1317 = vpack.c.bf16 %v1292, %v1291
        %v1318 = vpack.c.bf16 %v1294, %v1293
        %1319 = vset.pattern.permute.xlu0 2
        %1320 = vperm.xlu0 %1319, %v194
        %v1321 = vpop.permute.xlu0 %1320
        %1323 = vset.pattern.permute.xlu0 2
        %1324 = vperm.xlu0 %1323, %v195
        %v1325 = vpop.permute.xlu0 %1324
        %1327 = vset.pattern.permute.xlu0 2
        %1328 = vperm.xlu0 %1327, %v196
        %v1329 = vpop.permute.xlu0 %1328
        %1331 = vset.pattern.permute.xlu0 2
        %1332 = vperm.xlu0 %1331, %v197
        %v1333 = vpop.permute.xlu0 %1332
        %1335 = vset.pattern.permute.xlu0 2
        %1336 = vperm.xlu0 %1335, %v198
        %v1337 = vpop.permute.xlu0 %1336
        %1339 = vset.pattern.permute.xlu0 2
        %1340 = vperm.xlu0 %1339, %v199
        %v1341 = vpop.permute.xlu0 %1340
        %1343 = vset.pattern.permute.xlu0 2
        %1344 = vperm.xlu0 %1343, %v200
        %v1345 = vpop.permute.xlu0 %1344
        %1347 = vset.pattern.permute.xlu0 2
        %1348 = vperm.xlu0 %1347, %v201
        %v1349 = vpop.permute.xlu0 %1348
        %1351 = vset.pattern.permute.xlu0 2
        %1352 = vperm.xlu0 %1351, %v202
        %v1353 = vpop.permute.xlu0 %1352
        %1355 = vset.pattern.permute.xlu0 2
        %1356 = vperm.xlu0 %1355, %v203
        %v1357 = vpop.permute.xlu0 %1356
        %1359 = vset.pattern.permute.xlu0 2
        %1360 = vperm.xlu0 %1359, %v204
        %v1361 = vpop.permute.xlu0 %1360
        %1363 = vset.pattern.permute.xlu0 2
        %1364 = vperm.xlu0 %1363, %v205
        %v1365 = vpop.permute.xlu0 %1364
        %1367 = vset.pattern.permute.xlu0 2
        %1368 = vperm.xlu0 %1367, %v206
        %v1369 = vpop.permute.xlu0 %1368
        %1371 = vset.pattern.permute.xlu0 2
        %1372 = vperm.xlu0 %1371, %v207
        %v1373 = vpop.permute.xlu0 %1372
        %1375 = vset.pattern.permute.xlu0 2
        %1376 = vperm.xlu0 %1375, %v208
        %v1377 = vpop.permute.xlu0 %1376
        %1379 = vset.pattern.permute.xlu0 2
        %1380 = vperm.xlu0 %1379, %v209
        %v1381 = vpop.permute.xlu0 %1380
        %v1399 = vunpack.c.l.b16 %v1295
        %v1400 = vunpack.c.l.b16 %v1296
        %v1401 = vunpack.c.l.b16 %v1297
        %v1402 = vunpack.c.l.b16 %v1298
        %v1403 = vunpack.c.l.b16 %v1299
        %v1404 = vunpack.c.l.b16 %v1300
        %v1405 = vunpack.c.l.b16 %v1301
        %v1406 = vunpack.c.l.b16 %v1302
        %v1407 = vunpack.c.l.b16 %v1303
        %v1408 = vunpack.c.l.b16 %v1304
        %v1409 = vunpack.c.l.b16 %v1305
        %v1410 = vunpack.c.l.b16 %v1306
        %v1411 = vunpack.c.l.b16 %v1307
        %v1412 = vunpack.c.l.b16 %v1308
        %v1413 = vunpack.c.l.b16 %v1309
        %v1414 = vunpack.c.l.b16 %v1310
        %v1415 = vpack.c.b16 %v1400, %v1399
        %v1416 = vpack.c.b16 %v1402, %v1401
        %v1417 = vpack.c.b16 %v1404, %v1403
        %v1418 = vpack.c.b16 %v1406, %v1405
        %v1419 = vpack.c.b16 %v1408, %v1407
        %v1420 = vpack.c.b16 %v1410, %v1409
        %v1421 = vpack.c.b16 %v1412, %v1411
        %v1422 = vpack.c.b16 %v1414, %v1413
        %1431 = vmatprep.subr.bf16.mxu0 0
        %1432 = vmatpush1.bf16.msra.mxu0 %v1318
        %1433 = vmatprep.subr.bf16.mxu0 0
        %1434 = vmatpush1.bf16.msra.mxu0 %v1317
        %1435 = vmatprep.subr.bf16.mxu0 0
        %1436 = vmatpush1.bf16.msra.mxu0 %v1316
        %1437 = vmatprep.subr.bf16.mxu0 0
        %1438 = vmatpush1.bf16.msra.mxu0 %v1315
        %1439 = vmatprep.subr.bf16.mxu0 0
        %1440 = vmatpush1.bf16.msra.mxu0 %v1314
        %1441 = vmatprep.subr.bf16.mxu0 0
        %1442 = vmatpush1.bf16.msra.mxu0 %v1313
        %1443 = vmatprep.subr.bf16.mxu0 0
        %1444 = vmatpush1.bf16.msra.mxu0 %v1312
        %1445 = vmatprep.subr.bf16.mxu0 0
        %1446 = vmatpush1.bf16.msra.mxu0 %v1311
        %1447 = vmatprep.subr.bf16.mxu0 0
        %1448 = vmatpush2.bf16.msra.mxu0 0
        %1449 = vmatprep.subr.bf16.mxu0 0
        %1450 = vmatpush2.bf16.msra.mxu0 0
        %1451 = vmatprep.subr.bf16.mxu0 0
        %1452 = vmatpush2.bf16.msra.mxu0 0
        %1453 = vmatprep.subr.bf16.mxu0 0
        %1454 = vmatpush2.bf16.msra.mxu0 0
        %1455 = vmatprep.subr.bf16.mxu0 0
        %1456 = vmatpush2.bf16.msra.mxu0 0
        %1457 = vmatprep.subr.bf16.mxu0 0
        %1458 = vmatpush2.bf16.msra.mxu0 0
        %1459 = vmatprep.subr.bf16.mxu0 0
        %1460 = vmatpush2.bf16.msra.mxu0 0
        %1461 = vmatprep.subr.bf16.mxu0 0
        %1462 = vmatpush2.bf16.msra.mxu0 0
        %1463 = vmatprep.mubr.bf16.mxu0 0
        %1464 = vmatmul.mubr.bf16.gmra.mxu0 %v1415
        %v1465 = vpop.f32.mrf.mxu0
        %v1466 = vadd.f32 %v1321, %v1465
        %v1467 = vpop.f32.mrf.mxu0
        %v1468 = vpop.f32.mrf.mxu0
        %v1469 = vadd.f32 %v1325, %v1468
        %v1470 = vpop.f32.mrf.mxu0
        %1471 = vmatprep.mubr.bf16.mxu0 0
        %1472 = vmatmul.mubr.bf16.gmra.mxu0 %v1416
        %v1473 = vpop.f32.mrf.mxu0
        %v1474 = vadd.f32 %v1329, %v1473
        %v1475 = vpop.f32.mrf.mxu0
        %v1476 = vpop.f32.mrf.mxu0
        %v1477 = vadd.f32 %v1333, %v1476
        %v1478 = vpop.f32.mrf.mxu0
        %1479 = vmatprep.mubr.bf16.mxu0 0
        %1480 = vmatmul.mubr.bf16.gmra.mxu0 %v1417
        %v1481 = vpop.f32.mrf.mxu0
        %v1482 = vadd.f32 %v1337, %v1481
        %v1483 = vpop.f32.mrf.mxu0
        %v1484 = vpop.f32.mrf.mxu0
        %v1485 = vadd.f32 %v1341, %v1484
        %v1486 = vpop.f32.mrf.mxu0
        %1487 = vmatprep.mubr.bf16.mxu0 0
        %1488 = vmatmul.mubr.bf16.gmra.mxu0 %v1418
        %v1489 = vpop.f32.mrf.mxu0
        %v1490 = vadd.f32 %v1345, %v1489
        %v1491 = vpop.f32.mrf.mxu0
        %v1492 = vpop.f32.mrf.mxu0
        %v1493 = vadd.f32 %v1349, %v1492
        %v1494 = vpop.f32.mrf.mxu0
        %1495 = vmatprep.mubr.bf16.mxu0 0
        %1496 = vmatmul.mubr.bf16.gmra.mxu0 %v1419
        %v1497 = vpop.f32.mrf.mxu0
        %v1498 = vadd.f32 %v1353, %v1497
        %v1499 = vpop.f32.mrf.mxu0
        %v1500 = vpop.f32.mrf.mxu0
        %v1501 = vadd.f32 %v1357, %v1500
        %v1502 = vpop.f32.mrf.mxu0
        %1503 = vmatprep.mubr.bf16.mxu0 0
        %1504 = vmatmul.mubr.bf16.gmra.mxu0 %v1420
        %v1505 = vpop.f32.mrf.mxu0
        %v1506 = vadd.f32 %v1361, %v1505
        %v1507 = vpop.f32.mrf.mxu0
        %v1508 = vpop.f32.mrf.mxu0
        %v1509 = vadd.f32 %v1365, %v1508
        %v1510 = vpop.f32.mrf.mxu0
        %1511 = vmatprep.mubr.bf16.mxu0 0
        %1512 = vmatmul.mubr.bf16.gmra.mxu0 %v1421
        %v1513 = vpop.f32.mrf.mxu0
        %v1514 = vadd.f32 %v1369, %v1513
        %v1515 = vpop.f32.mrf.mxu0
        %v1516 = vpop.f32.mrf.mxu0
        %v1517 = vadd.f32 %v1373, %v1516
        %v1518 = vpop.f32.mrf.mxu0
        %1519 = vmatprep.mubr.bf16.mxu0 0
        %1520 = vmatmul.mubr.bf16.gmra.mxu0 %v1422
        %v1521 = vpop.f32.mrf.mxu0
        %v1522 = vadd.f32 %v1377, %v1521
        %v1523 = vpop.f32.mrf.mxu0
        %v1524 = vpop.f32.mrf.mxu0
        %v1525 = vadd.f32 %v1381, %v1524
        %v1526 = vpop.f32.mrf.mxu0
        %1527 = vdwg.mxu0
        %v1528 = vmax.f32 %v1466, 0.0
        %v1529 = vmax.f32 %v1469, 0.0
        %v1530 = vmax.f32 %v1474, 0.0
        %v1531 = vmax.f32 %v1477, 0.0
        %v1532 = vmax.f32 %v1482, 0.0
        %v1533 = vmax.f32 %v1485, 0.0
        %v1534 = vmax.f32 %v1490, 0.0
        %v1535 = vmax.f32 %v1493, 0.0
        %v1536 = vmax.f32 %v1498, 0.0
        %v1537 = vmax.f32 %v1501, 0.0
        %v1538 = vmax.f32 %v1506, 0.0
        %v1539 = vmax.f32 %v1509, 0.0
        %v1540 = vmax.f32 %v1514, 0.0
        %v1541 = vmax.f32 %v1517, 0.0
        %v1542 = vmax.f32 %v1522, 0.0
        %v1543 = vmax.f32 %v1525, 0.0
        %1544 = vset.pattern.permute.xlu0 3
        %1545 = vperm.xlu0 %1544, %v194
        %v1546 = vpop.permute.xlu0 %1545
        %1548 = vset.pattern.permute.xlu0 3
        %1549 = vperm.xlu0 %1548, %v195
        %v1550 = vpop.permute.xlu0 %1549
        %1552 = vset.pattern.permute.xlu0 3
        %1553 = vperm.xlu0 %1552, %v196
        %v1554 = vpop.permute.xlu0 %1553
        %1556 = vset.pattern.permute.xlu0 3
        %1557 = vperm.xlu0 %1556, %v197
        %v1558 = vpop.permute.xlu0 %1557
        %1560 = vset.pattern.permute.xlu0 3
        %1561 = vperm.xlu0 %1560, %v198
        %v1562 = vpop.permute.xlu0 %1561
        %1564 = vset.pattern.permute.xlu0 3
        %1565 = vperm.xlu0 %1564, %v199
        %v1566 = vpop.permute.xlu0 %1565
        %1568 = vset.pattern.permute.xlu0 3
        %1569 = vperm.xlu0 %1568, %v200
        %v1570 = vpop.permute.xlu0 %1569
        %1572 = vset.pattern.permute.xlu0 3
        %1573 = vperm.xlu0 %1572, %v201
        %v1574 = vpop.permute.xlu0 %1573
        %1576 = vset.pattern.permute.xlu0 3
        %1577 = vperm.xlu0 %1576, %v202
        %v1578 = vpop.permute.xlu0 %1577
        %1580 = vset.pattern.permute.xlu0 3
        %1581 = vperm.xlu0 %1580, %v203
        %v1582 = vpop.permute.xlu0 %1581
        %1584 = vset.pattern.permute.xlu0 3
        %1585 = vperm.xlu0 %1584, %v204
        %v1586 = vpop.permute.xlu0 %1585
        %1588 = vset.pattern.permute.xlu0 3
        %1589 = vperm.xlu0 %1588, %v205
        %v1590 = vpop.permute.xlu0 %1589
        %1592 = vset.pattern.permute.xlu0 3
        %1593 = vperm.xlu0 %1592, %v206
        %v1594 = vpop.permute.xlu0 %1593
        %1596 = vset.pattern.permute.xlu0 3
        %1597 = vperm.xlu0 %1596, %v207
        %v1598 = vpop.permute.xlu0 %1597
        %1600 = vset.pattern.permute.xlu0 3
        %1601 = vperm.xlu0 %1600, %v208
        %v1602 = vpop.permute.xlu0 %1601
        %1604 = vset.pattern.permute.xlu0 3
        %1605 = vperm.xlu0 %1604, %v209
        %v1606 = vpop.permute.xlu0 %1605
        %v1608 = vmul.f32 %v1528, %v1546
        %v1609 = vmul.f32 %v1529, %v1550
        %v1610 = vmul.f32 %v1530, %v1554
        %v1611 = vmul.f32 %v1531, %v1558
        %v1612 = vmul.f32 %v1532, %v1562
        %v1613 = vmul.f32 %v1533, %v1566
        %v1614 = vmul.f32 %v1534, %v1570
        %v1615 = vmul.f32 %v1535, %v1574
        %v1616 = vmul.f32 %v1536, %v1578
        %v1617 = vmul.f32 %v1537, %v1582
        %v1618 = vmul.f32 %v1538, %v1586
        %v1619 = vmul.f32 %v1539, %v1590
        %v1620 = vmul.f32 %v1540, %v1594
        %v1621 = vmul.f32 %v1541, %v1598
        %v1622 = vmul.f32 %v1542, %v1602
        %v1623 = vmul.f32 %v1543, %v1606
        %v1624 = vadd.f32 %v1608, %v1609
        %v1625 = vadd.f32 %v1624, %v1610
        %v1626 = vadd.f32 %v1625, %v1611
        %v1627 = vadd.f32 %v1626, %v1612
        %v1628 = vadd.f32 %v1627, %v1613
        %v1629 = vadd.f32 %v1628, %v1614
        %v1630 = vadd.f32 %v1629, %v1615
        %v1631 = vadd.f32 %v1630, %v1616
        %v1632 = vadd.f32 %v1631, %v1617
        %v1633 = vadd.f32 %v1632, %v1618
        %v1634 = vadd.f32 %v1633, %v1619
        %v1635 = vadd.f32 %v1634, %v1620
        %v1636 = vadd.f32 %v1635, %v1621
        %v1637 = vadd.f32 %v1636, %v1622
        %v1638 = vadd.f32 %v1637, %v1623
        %v1639 = vrot.slane %v1638, 4
        %v1640 = vadd.f32 %v1638, %v1639
        %v1641 = vrot.slane %v1640, 2
        %v1642 = vadd.f32 %v1640, %v1641
        %v1643 = vrot.slane %v1642, 1
        %v1644 = vadd.f32 %v1642, %v1643
        %1645 = vset.pattern.permute.xlu0 4
        %1646 = vperm.xlu0 %1645, %v194
        %v1647 = vpop.permute.xlu0 %1646
        %v1649 = vadd.f32 %v1644, %v1647
        %v1650 = vtanh.pop %v1649
        %v1651 = vmul.f32 %v1650, 2.0
        %1652 = vst [vmem:[%s187] sm:$0x1] %v1651
        %s1653 = sand.u32 %s115, 1
        %s1654 = scalar_lea.sflag [#allocation3], %s1653
        %s1655 = sand.u32 %s115, 1
        %s1656 = scalar_lea.vmem [#allocation2], %s1655
        // Predicated region
        $region37: #{tpu_custom_call.1} parent=35 // pred_check
          %p1657 = pneg %p125
        $region38: #{tpu_custom_call.1} parent=35 // pred_check_branch
          %1659 = sbr.rel (%p1657) target = $region40
        $region39: #{tpu_custom_call.1} parent=35 // pred_region
          %s1661 = ssub.s32 16, 16
          %1662 = vsyncadd %s1654, %s1661
          %s1663 = smul.addr %s18, 16
          %s1664 = scalar_lea.hbm %s4, %s1663
          %s1666 = sshll.u32 %s1656, 4
          %s1667 = int_to_ptr.vmem [resolvable:$true] %s1666
          %1669 = dma.vmem_to_hbm [thread:$0]  %s1667, 16, %s1664, %s1654
        $region40: #{tpu_custom_call.1} parent=35 // pred_fallthru
          _
      $region36: #{tpu_custom_call.1} parent=5 // pred_fallthru
        _
      %p1670 = scmp.le.s32.totalorder 2, %s13
      // Predicated region
      $region41: #{tpu_custom_call.1} parent=5 // pred_check
        %p1671 = pneg %p1670
      $region42: #{tpu_custom_call.1} parent=5 // pred_check_branch
        %1673 = sbr.rel (%p1671) target = $region44
      $region43: #{tpu_custom_call.1} parent=5 // pred_region
        %s1674 = ssub.s32 %s13, 2
        // Predicated region
        $region45: #{tpu_custom_call.1} parent=43 // pred_check
          %p1675 = pneg %p131
        $region46: #{tpu_custom_call.1} parent=43 // pred_check_branch
          %1677 = sbr.rel (%p1675) target = $region48
        $region47: #{tpu_custom_call.1} parent=43 // pred_region
          %s1678 = sand.u32 %s116, 1
          %s1679 = scalar_lea.sflag [#allocation3], %s1678
          %s1680 = sand.u32 %s116, 1
          %s1681 = scalar_lea.vmem [#allocation2], %s1680
          %1682 = dma.done %s1679, 16
        $region48: #{tpu_custom_call.1} parent=43 // pred_fallthru
          _
      $region44: #{tpu_custom_call.1} parent=5 // pred_fallthru
        _
    $region6: #{tpu_custom_call.1} parent=1 // loop_footer
      %s17 = sadd.s32 1, %s13
    $region7: #{tpu_custom_call.1} parent=1 // loop_footer_branch
      %12 = sbr.rel target = $region3
    $region8: #{tpu_custom_call.1} parent=1 // loop_exit
      _
    %1683 = vsyncpa [#allocation3], 1
    %s1684 = scalar_lea.sflag [#allocation3], 1
    %1685 = vsyncpa %s1684, 1

</llo_original>
